<compile_context>
chip_gen: v6e
topology: v6e:2x2x1
jax: 0.10.0
libtpu: 0.0.40
codegen_flags: <defaults>
</compile_context>

<pallas_src>
import functools

import jax
import jax.numpy as jnp
from jax.experimental import pallas as pl
from jax.experimental.pallas import tpu as pltpu


def _round_up(x: int, m: int) -> int:
    return (x + m - 1) // m * m


def _vmem_capacity_bytes() -> int:
    try:
        return int(pltpu.get_tpu_info().vmem_capacity_bytes)
    except Exception:
        return 64 << 20  # v7x per-TC physical VMEM: the tightest generation


def _fused_kernel(x_ref, w_ref, b_ref, o_ref):
    # x_ref: (M, tm, D_in)   f32  -- new batch tile every grid step
    # w_ref: (M, D_in, D_out) f32 -- resident across the whole grid
    # b_ref: (M, 1, D_out)   f32  -- resident
    # o_ref: (M, tm, D_out)  out dtype (bf16 by default)
    x = x_ref[...].astype(jnp.bfloat16)          # in-kernel cast: no extra HBM pass
    w = w_ref[...].astype(jnp.bfloat16)
    acc = jnp.einsum("mbi,mio->mbo", x, w, preferred_element_type=jnp.float32)
    o_ref[...] = (acc + b_ref[...]).astype(o_ref.dtype)


def _grouped_kernel(x_ref, w_ref, b_ref, o_ref):
    # x_ref: (tm, D_in), w_ref: (D_in, D_out), b_ref: (1, D_out), o_ref: (tm, D_out)
    x = x_ref[...].astype(jnp.bfloat16)
    w = w_ref[...].astype(jnp.bfloat16)
    acc = jnp.dot(x, w, preferred_element_type=jnp.float32)
    o_ref[...] = (acc + b_ref[...]).astype(o_ref.dtype)


@functools.partial(jax.jit, static_argnames=("out_dtype",))
def metadata_mlps_forward(x, w_t, b, *, out_dtype=jnp.bfloat16):
    """Per-metadata-group linear layers, equivalent to
       [nn.Linear(D_in, D_out)(x[m]) for m in range(metadata_dim)].

    x   : (metadata_dim, B, D_in)      f32  embedded metadata per group
    w_t : (metadata_dim, D_in, D_out)  f32  (transpose of each torch weight)
    b   : (metadata_dim, D_out)        f32
    returns (metadata_dim, B, D_out)   out_dtype (bf16 default; pass jnp.float32 for
                                       torch-exact output storage at 2x store bytes)
    """
    M, B, D_in = x.shape
    D_out = w_t.shape[-1]
    assert w_t.shape == (M, D_in, D_out) and b.shape == (M, D_out)

    x_bytes = jnp.dtype(x.dtype).itemsize
    w_bytes = jnp.dtype(w_t.dtype).itemsize
    out_bytes = jnp.dtype(out_dtype).itemsize

    b3 = b.reshape(M, 1, D_out)  # tiny array; negligible wrapper work

    # ---- VMEM-aware batch tiling. No jnp.pad on the batch axis and no output slice:
    #      Pallas clips write-back of a ragged trailing block, and each output row only
    #      depends on its own input row. ----
    vmem_cap = _vmem_capacity_bytes()
    budget = min(vmem_cap // 2, 32 << 20)  # leave headroom for the compiler / 2nd core

    weights_resident = M * D_in * D_out * w_bytes + M * D_out * 4
    fused_row_bytes = 2 * M * (D_in * x_bytes + D_out * out_bytes)  # double-buffered x + out
    fuse_m = weights_resident + 8 * fused_row_bytes <= budget
    B8 = _round_up(B, 8)

    if fuse_m:
        # All M weight slabs fit VMEM: collapse the M grid axis, leave only batch tiles.
        tm = (budget - weights_resident) // fused_row_bytes
        tm = max(8, min(B8, 2048, (tm // 8) * 8))
        nbt = pl.cdiv(B, tm)
        working_set = weights_resident + tm * fused_row_bytes
        grid = (nbt,)
        in_specs = [
            pl.BlockSpec((M, tm, D_in), lambda i: (0, i, 0)),
            pl.BlockSpec((M, D_in, D_out), lambda i: (0, 0, 0)),   # resident
            pl.BlockSpec((M, 1, D_out), lambda i: (0, 0, 0)),      # resident
        ]
        out_specs = pl.BlockSpec((M, tm, D_out), lambda i: (0, i, 0))
        kernel = _fused_kernel
    else:
        # Large production dims: per-group weight slab, flattened 1-D grid (batch-fastest).
        per_group_resident = D_in * D_out * w_bytes + D_out * 4
        row_bytes = 2 * (D_in * x_bytes + D_out * out_bytes)
        tm = (budget - per_group_resident) // row_bytes
        tm = max(8, min(B8, 2048, (tm // 8) * 8))
        nbt = pl.cdiv(B, tm)
        working_set = per_group_resident + tm * row_bytes
        grid = (M * nbt,)
        in_specs = [
            pl.BlockSpec((None, tm, D_in), lambda g: (g // nbt, g % nbt, 0)),
            pl.BlockSpec((None, D_in, D_out), lambda g: (g // nbt, 0, 0)),
            pl.BlockSpec((None, 1, D_out), lambda g: (g // nbt, 0, 0)),
        ]
        out_specs = pl.BlockSpec((None, tm, D_out), lambda g: (g // nbt, g % nbt, 0))
        kernel = _grouped_kernel

    vmem_limit = int(min(vmem_cap, max(2 * working_set, 16 << 20)))

    return pl.pallas_call(
        kernel,
        out_shape=jax.ShapeDtypeStruct((M, B, D_out), out_dtype),
        grid=grid,
        in_specs=in_specs,
        out_specs=out_specs,
        compiler_params=pltpu.CompilerParams(
            dimension_semantics=("parallel",),   # single independent axis: megacore-friendly
            vmem_limit_bytes=vmem_limit,
        ),
    )(x, w_t, b3)


if __name__ == "__main__":
    key = jax.random.PRNGKey(0)
    k_x, k_w, k_b = jax.random.split(key, 3)

    # Shapes consistent with metadata_embeddings: each MetadataMLP is
    # nn.Linear(embedding_dim, embedding_dim * 4), one per metadata column.
    batch = 8
    embedding_dim = 32
    metadata_dim = 3
    d_in = embedding_dim
    d_out = 4 * embedding_dim  # 128 lanes -> stores are already lane-dense

    # Deterministic nn.Linear-style init; torch weight is (d_out, d_in), keep its transpose.
    bound = 1.0 / (d_in ** 0.5)
    w_torch = jax.random.uniform(
        k_w, (metadata_dim, d_out, d_in), jnp.float32, -bound, bound)
    b = jax.random.uniform(k_b, (metadata_dim, d_out), jnp.float32, -bound, bound)
    w_t = jnp.transpose(w_torch, (0, 2, 1))

    # TODO(synk): SinusoidalEmbedding and create_condition_vector are not defined in the
    # provided spec; we feed pre-embedded per-group metadata straight to the MLPs.
    x = jax.random.normal(k_x, (metadata_dim, batch, d_in), jnp.float32)

    ref = jnp.einsum("mbi,mio->mbo", x, w_t,
                     precision=jax.lax.Precision.HIGHEST) + b[:, None, :]

    # Default path: bf16 activations out (biggest HBM-traffic lever), f32 accumulation.
    y = metadata_mlps_forward(x, w_t, b)
    jax.block_until_ready(y)
    assert y.shape == (metadata_dim, batch, d_out)
    assert y.dtype == jnp.bfloat16
    assert jnp.allclose(y.astype(jnp.float32), ref, atol=3e-2, rtol=3e-2)

    # Optional f32-output path (torch-exact storage dtype); bf16 MXU inputs, f32 accum.
    y32 = metadata_mlps_forward(x, w_t, b, out_dtype=jnp.float32)
    jax.block_until_ready(y32)
    assert y32.dtype == jnp.float32
    assert jnp.allclose(y32, ref, atol=2e-2, rtol=2e-2)

    print("KERNEL_OK")
</pallas_src>

<mosaic_0001>
module attributes {stable_mosaic.version = 11 : i64} {
  func.func @_fused_kernel(%arg0: i32, %arg1: memref<3x8x32xf32, #tpu.memory_space<vmem>>, %arg2: memref<3x32x128xf32, #tpu.memory_space<vmem>>, %arg3: memref<3x1x128xf32, #tpu.memory_space<vmem>>, %arg4: memref<3x8x128xbf16, #tpu.memory_space<vmem>>) attributes {dimension_semantics = [#tpu.dimension_semantics<parallel>], iteration_bounds = array<i64: 1>, scalar_prefetch = 0 : i64, scratch_operands = 0 : i64, tpu.core_type = #tpu.core_type<tc>, window_params = [{transform_indices = @transform_0, window_bounds = array<i64: 3, 8, 32>}, {pipeline_mode = #tpu.pipeline_mode<synchronous>, transform_indices = @transform_1, window_bounds = array<i64: 3, 32, 128>}, {pipeline_mode = #tpu.pipeline_mode<synchronous>, transform_indices = @transform_2, window_bounds = array<i64: 3, 1, 128>}, {transform_indices = @transform_3, window_bounds = array<i64: 3, 8, 128>}]} {
    %c0 = arith.constant 0 : index
    %c0_0 = arith.constant 0 : index
    %c0_1 = arith.constant 0 : index
    %0 = vector.load %arg1[%c0, %c0_0, %c0_1] : memref<3x8x32xf32, #tpu.memory_space<vmem>>, vector<3x8x32xf32>
    %1 = arith.truncf %0 : vector<3x8x32xf32> to vector<3x8x32xbf16>
    %c0_2 = arith.constant 0 : index
    %c0_3 = arith.constant 0 : index
    %c0_4 = arith.constant 0 : index
    %2 = vector.load %arg2[%c0_2, %c0_3, %c0_4] : memref<3x32x128xf32, #tpu.memory_space<vmem>>, vector<3x32x128xf32>
    %3 = arith.truncf %2 : vector<3x32x128xf32> to vector<3x32x128xbf16>
    "tpu.trace_start"() <{level = 10 : i32, message = "mbi,mio->mbo"}> : () -> ()
    %cst = arith.constant dense<0.000000e+00> : vector<3x8x128xf32>
    %4 = tpu.matmul %1, %3, %cst {dimension_numbers = #tpu.dot_dimension_numbers<[2], [1], [1], [2], [0, 0, 0, 1, 1, 2], [0], [0]>} : vector<3x8x32xbf16>, vector<3x32x128xbf16>, vector<3x8x128xf32> -> vector<3x8x128xf32>
    "tpu.trace_stop"() : () -> ()
    %c0_5 = arith.constant 0 : index
    %c0_6 = arith.constant 0 : index
    %c0_7 = arith.constant 0 : index
    %5 = vector.load %arg3[%c0_5, %c0_6, %c0_7] : memref<3x1x128xf32, #tpu.memory_space<vmem>>, vector<3x1x128xf32>
    %6 = vector.broadcast %5 : vector<3x1x128xf32> to vector<3x8x128xf32>
    %7 = arith.addf %4, %6 : vector<3x8x128xf32>
    %8 = arith.truncf %7 : vector<3x8x128xf32> to vector<3x8x128xbf16>
    %c0_8 = arith.constant 0 : index
    %c0_9 = arith.constant 0 : index
    %c0_10 = arith.constant 0 : index
    %9 = vector.load %arg4[%c0_8, %c0_9, %c0_10] : memref<3x8x128xbf16, #tpu.memory_space<vmem>>, vector<3x8x128xbf16>
    tpu.vector_store %arg4[%c0_8, %c0_9, %c0_10], %8 {strides = array<i32>} : memref<3x8x128xbf16, #tpu.memory_space<vmem>>, vector<3x8x128xbf16>,
    return
  }
  func.func @transform_0(%arg0: i32) -> (i32, i32, i32) {
    %c0_i32 = arith.constant 0 : i32
    %c0_i32_0 = arith.constant 0 : i32
    %c0_i32_1 = arith.constant 0 : i32
    return %c0_i32, %arg0, %c0_i32_0 : i32, i32, i32
  }
  func.func @transform_1(%arg0: i32) -> (i32, i32, i32) {
    %c0_i32 = arith.constant 0 : i32
    %c0_i32_0 = arith.constant 0 : i32
    %c0_i32_1 = arith.constant 0 : i32
    %c0_i32_2 = arith.constant 0 : i32
    return %c0_i32, %c0_i32_0, %c0_i32_1 : i32, i32, i32
  }
  func.func @transform_2(%arg0: i32) -> (i32, i32, i32) {
    %c0_i32 = arith.constant 0 : i32
    %c0_i32_0 = arith.constant 0 : i32
    %c0_i32_1 = arith.constant 0 : i32
    %c0_i32_2 = arith.constant 0 : i32
    return %c0_i32, %c0_i32_0, %c0_i32_1 : i32, i32, i32
  }
  func.func @transform_3(%arg0: i32) -> (i32, i32, i32) {
    %c0_i32 = arith.constant 0 : i32
    %c0_i32_0 = arith.constant 0 : i32
    %c0_i32_1 = arith.constant 0 : i32
    return %c0_i32, %arg0, %c0_i32_0 : i32, i32, i32
  }
}

</mosaic_0001>

<llo_original>
// kernel: metadata_mlps_forward.1
$region0: #{metadata_mlps_forward.1}
  #allocation0 [shape = 'u32[]', space=smem, size = 0x4, offset = 0x4, fixed_abs, tag = 'smem constant byte address 0x4 - core index']
  #allocation1 [shape = 'u32[144,128]{1,0:T(1,128)}', space=vmem, size = 0x12000, scoped, tag = 'internal scratch']
  %s0 = inlined_call_operand.hbm [shape: f32[3,8,32], index: 0, kind: input, shape index: {}]
  %s1 = inlined_call_operand.hbm [shape: f32[3,32,128], index: 1, kind: input, shape index: {}]
  %s2 = inlined_call_operand.vmem [shape: f32[3,1,128], index: 2, kind: input, shape index: {}]
  %s3 = inlined_call_operand.hbm [shape: bf16[3,8,128], index: 3, kind: output, shape index: {}]
  %s4 = sld [smem:[#allocation0]]
  $region30: #{metadata_mlps_forward.1} parent=0
    _
  %s6 = ssub.s32 1, %s4
  %s7 = scalar_select 0, %s6, %s4
  $region1: #{metadata_mlps_forward.1} parent=0
    #allocation2 [shape = 'u8[12288]{0}', space=vmem, size = 0x3000, scoped, tag = 'input window, operand 0, single buffered']
    #allocation3 [shape = 's32[1]{0}', space=sflag, size = 0x4, scoped, tag = 'scoped memory for metadata_mlps_forward.1']
    #allocation4 [shape = 's32[1]{0}', space=sflag, size = 0x4, scoped, tag = 'scoped memory for metadata_mlps_forward.1']
    #allocation5 [shape = 'u8[49152]{0}', space=vmem, size = 0xc000, scoped, tag = 'input window, operand 1, single buffered']
    #allocation6 [shape = 's32[1]{0}', space=sflag, size = 0x4, scoped, tag = 'scoped memory for metadata_mlps_forward.1']
    #allocation7 [shape = 'u8[6144]{0}', space=vmem, size = 0x1800, scoped, tag = 'output window, operand 0, single buffered']
    %8 = vsyncpa [#allocation3], 0
    %9 = vsyncpa [#allocation6], 0
    %10 = vsyncpa [#allocation4], 0
    // Predicated region
    $region2: #{metadata_mlps_forward.1} parent=1 // pred_check
      _
    $region3: #{metadata_mlps_forward.1} parent=1 // pred_check_branch
      %12 = sbr.rel (0) target = $region5
    $region4: #{metadata_mlps_forward.1} parent=1 // pred_region
      %s14 = ssub.s32 384, 384
      %15 = vsyncadd [#allocation3], %s14
      %s16 = sshll.u32 [#allocation2], 4
      %s17 = int_to_ptr.vmem [resolvable:$true] %s16
      %22 = dma.hbm_to_vmem [thread:$0]  %s0, 384, %s17, [#allocation3], 128, 128, 8
    $region5: #{metadata_mlps_forward.1} parent=1 // pred_fallthru
      _
    // Predicated region
    $region6: #{metadata_mlps_forward.1} parent=1 // pred_check
      _
    $region7: #{metadata_mlps_forward.1} parent=1 // pred_check_branch
      %24 = sbr.rel (0) target = $region9
    $region8: #{metadata_mlps_forward.1} parent=1 // pred_region
      %s26 = ssub.s32 1536, 1536
      %27 = vsyncadd [#allocation6], %s26
      %s28 = sshll.u32 [#allocation5], 4
      %s29 = int_to_ptr.vmem [resolvable:$true] %s28
      %34 = dma.hbm_to_vmem [thread:$0]  %s1, 1536, %s29, [#allocation6], 128, 128, 8
    $region9: #{metadata_mlps_forward.1} parent=1 // pred_fallthru
      _
    // Predicated region
    $region10: #{metadata_mlps_forward.1} parent=1 // pred_check
      _
    $region11: #{metadata_mlps_forward.1} parent=1 // pred_check_branch
      %36 = sbr.rel (0) target = $region13
    $region12: #{metadata_mlps_forward.1} parent=1 // pred_region
      _
    $region13: #{metadata_mlps_forward.1} parent=1 // pred_fallthru
      _
    // Predicated region
    $region14: #{metadata_mlps_forward.1} parent=1 // pred_check
      _
    $region15: #{metadata_mlps_forward.1} parent=1 // pred_check_branch
      %38 = sbr.rel (0) target = $region17
    $region16: #{metadata_mlps_forward.1} parent=1 // pred_region
      %39 = dma.done [#allocation3], 384
    $region17: #{metadata_mlps_forward.1} parent=1 // pred_fallthru
      _
    // Predicated region
    $region18: #{metadata_mlps_forward.1} parent=1 // pred_check
      _
    $region19: #{metadata_mlps_forward.1} parent=1 // pred_check_branch
      %41 = sbr.rel (0) target = $region21
    $region20: #{metadata_mlps_forward.1} parent=1 // pred_region
      %42 = dma.done [#allocation6], 1536
    $region21: #{metadata_mlps_forward.1} parent=1 // pred_fallthru
      _
    %v44 = vld [vmem:[#allocation2] sm:$0xff]
    %v45 = vld [vmem:[#allocation2 + $0x8] sm:$0xff]
    %v46 = vld [vmem:[#allocation2 + $0x10] sm:$0xff]
    %v47 = vpack.c.bf16 %v44, %v44
    %v48 = vpack.c.bf16 %v45, %v45
    %v49 = vpack.c.bf16 %v46, %v46
    %v50 = vld [vmem:[#allocation5] sm:$0xff]
    %v51 = vld [vmem:[#allocation5 + $0x8] sm:$0xff]
    %v52 = vld [vmem:[#allocation5 + $0x10] sm:$0xff]
    %v53 = vld [vmem:[#allocation5 + $0x18] sm:$0xff]
    %v54 = vld [vmem:[#allocation5 + $0x20] sm:$0xff]
    %v55 = vld [vmem:[#allocation5 + $0x28] sm:$0xff]
    %v56 = vld [vmem:[#allocation5 + $0x30] sm:$0xff]
    %v57 = vld [vmem:[#allocation5 + $0x38] sm:$0xff]
    %v58 = vld [vmem:[#allocation5 + $0x40] sm:$0xff]
    %v59 = vld [vmem:[#allocation5 + $0x48] sm:$0xff]
    %v60 = vld [vmem:[#allocation5 + $0x50] sm:$0xff]
    %v61 = vld [vmem:[#allocation5 + $0x58] sm:$0xff]
    %v62 = vpack.c.bf16 %v51, %v50
    %v63 = vpack.c.bf16 %v53, %v52
    %v64 = vpack.c.bf16 %v55, %v54
    %v65 = vpack.c.bf16 %v57, %v56
    %v66 = vpack.c.bf16 %v59, %v58
    %v67 = vpack.c.bf16 %v61, %v60
    %v68 = vld [vmem:[%s2] sm:$0x1]
    %v69 = vld [vmem:[%s2 + $0x1] sm:$0x1]
    %v70 = vld [vmem:[%s2 + $0x2] sm:$0x1]
    %v74 = vlaneseq
    %v75 = vshrl.u32 %v74, 7
    %v76 = vsub.s32 0, %v75
    %v77 = vrot.slane %v68, %v76
    %v78 = vlaneseq
    %v79 = vshrl.u32 %v78, 7
    %v80 = vsub.s32 0, %v79
    %v81 = vrot.slane %v69, %v80
    %v82 = vlaneseq
    %v83 = vshrl.u32 %v82, 7
    %v84 = vsub.s32 0, %v83
    %v85 = vrot.slane %v70, %v84
    %vm89 = vcmask 261120
    %v91 = vsel %vm89, %v47, 0
    %93 = vmatprep.subr.bf16.mxu0 0
    %94 = vmatpush1.bf16.msra.mxu0 0
    %95 = vmatprep.subr.bf16.mxu0 0
    %96 = vmatpush1.bf16.msra.mxu0 0
    %97 = vmatprep.subr.bf16.mxu0 0
    %98 = vmatpush1.bf16.msra.mxu0 0
    %99 = vmatprep.subr.bf16.mxu0 0
    %100 = vmatpush1.bf16.msra.mxu0 0
    %101 = vmatprep.subr.bf16.mxu0 0
    %102 = vmatpush1.bf16.msra.mxu0 0
    %103 = vmatprep.subr.bf16.mxu0 0
    %104 = vmatpush1.bf16.msra.mxu0 0
    %105 = vmatprep.subr.bf16.mxu0 0
    %106 = vmatpush1.bf16.msra.mxu0 %v63
    %107 = vmatprep.subr.bf16.mxu0 0
    %108 = vmatpush1.bf16.msra.mxu0 %v62
    %109 = vmatprep.subr.bf16.mxu0 0
    %110 = vmatpush2.bf16.msra.mxu0 0
    %111 = vmatprep.subr.bf16.mxu0 0
    %112 = vmatpush2.bf16.msra.mxu0 0
    %113 = vmatprep.subr.bf16.mxu0 0
    %114 = vmatpush2.bf16.msra.mxu0 0
    %115 = vmatprep.subr.bf16.mxu0 0
    %116 = vmatpush2.bf16.msra.mxu0 0
    %117 = vmatprep.subr.bf16.mxu0 0
    %118 = vmatpush2.bf16.msra.mxu0 0
    %119 = vmatprep.subr.bf16.mxu0 0
    %120 = vmatpush2.bf16.msra.mxu0 0
    %121 = vmatprep.subr.bf16.mxu0 0
    %122 = vmatpush2.bf16.msra.mxu0 0
    %123 = vmatprep.subr.bf16.mxu0 0
    %124 = vmatpush2.bf16.msra.mxu0 0
    %125 = vmatprep.mubr.bf16.mxu0 0
    %126 = vmatmul.mubr.bf16.gmra.mxu0 %v91
    %v127 = vpop.f32.mrf.mxu0
    %v128 = vadd.f32 %v77, %v127
    %v129 = vpop.f32.mrf.mxu0
    %v130 = vpop.f32.mrf.mxu0
    %v131 = vpop.f32.mrf.mxu0
    %132 = vdwg.mxu0
    %v134 = vsel %vm89, %v48, 0
    %136 = vmatprep.subr.bf16.mxu0 0
    %137 = vmatpush1.bf16.msra.mxu0 0
    %138 = vmatprep.subr.bf16.mxu0 0
    %139 = vmatpush1.bf16.msra.mxu0 0
    %140 = vmatprep.subr.bf16.mxu0 0
    %141 = vmatpush1.bf16.msra.mxu0 0
    %142 = vmatprep.subr.bf16.mxu0 0
    %143 = vmatpush1.bf16.msra.mxu0 0
    %144 = vmatprep.subr.bf16.mxu0 0
    %145 = vmatpush1.bf16.msra.mxu0 0
    %146 = vmatprep.subr.bf16.mxu0 0
    %147 = vmatpush1.bf16.msra.mxu0 0
    %148 = vmatprep.subr.bf16.mxu0 0
    %149 = vmatpush1.bf16.msra.mxu0 %v65
    %150 = vmatprep.subr.bf16.mxu0 0
    %151 = vmatpush1.bf16.msra.mxu0 %v64
    %152 = vmatprep.subr.bf16.mxu0 0
    %153 = vmatpush2.bf16.msra.mxu0 0
    %154 = vmatprep.subr.bf16.mxu0 0
    %155 = vmatpush2.bf16.msra.mxu0 0
    %156 = vmatprep.subr.bf16.mxu0 0
    %157 = vmatpush2.bf16.msra.mxu0 0
    %158 = vmatprep.subr.bf16.mxu0 0
    %159 = vmatpush2.bf16.msra.mxu0 0
    %160 = vmatprep.subr.bf16.mxu0 0
    %161 = vmatpush2.bf16.msra.mxu0 0
    %162 = vmatprep.subr.bf16.mxu0 0
    %163 = vmatpush2.bf16.msra.mxu0 0
    %164 = vmatprep.subr.bf16.mxu0 0
    %165 = vmatpush2.bf16.msra.mxu0 0
    %166 = vmatprep.subr.bf16.mxu0 0
    %167 = vmatpush2.bf16.msra.mxu0 0
    %168 = vmatprep.mubr.bf16.mxu0 0
    %169 = vmatmul.mubr.bf16.gmra.mxu0 %v134
    %v170 = vpop.f32.mrf.mxu0
    %v171 = vadd.f32 %v81, %v170
    %v172 = vpop.f32.mrf.mxu0
    %v173 = vpop.f32.mrf.mxu0
    %v174 = vpop.f32.mrf.mxu0
    %175 = vdwg.mxu0
    %v177 = vsel %vm89, %v49, 0
    %179 = vmatprep.subr.bf16.mxu0 0
    %180 = vmatpush1.bf16.msra.mxu0 0
    %181 = vmatprep.subr.bf16.mxu0 0
    %182 = vmatpush1.bf16.msra.mxu0 0
    %183 = vmatprep.subr.bf16.mxu0 0
    %184 = vmatpush1.bf16.msra.mxu0 0
    %185 = vmatprep.subr.bf16.mxu0 0
    %186 = vmatpush1.bf16.msra.mxu0 0
    %187 = vmatprep.subr.bf16.mxu0 0
    %188 = vmatpush1.bf16.msra.mxu0 0
    %189 = vmatprep.subr.bf16.mxu0 0
    %190 = vmatpush1.bf16.msra.mxu0 0
    %191 = vmatprep.subr.bf16.mxu0 0
    %192 = vmatpush1.bf16.msra.mxu0 %v67
    %193 = vmatprep.subr.bf16.mxu0 0
    %194 = vmatpush1.bf16.msra.mxu0 %v66
    %195 = vmatprep.subr.bf16.mxu0 0
    %196 = vmatpush2.bf16.msra.mxu0 0
    %197 = vmatprep.subr.bf16.mxu0 0
    %198 = vmatpush2.bf16.msra.mxu0 0
    %199 = vmatprep.subr.bf16.mxu0 0
    %200 = vmatpush2.bf16.msra.mxu0 0
    %201 = vmatprep.subr.bf16.mxu0 0
    %202 = vmatpush2.bf16.msra.mxu0 0
    %203 = vmatprep.subr.bf16.mxu0 0
    %204 = vmatpush2.bf16.msra.mxu0 0
    %205 = vmatprep.subr.bf16.mxu0 0
    %206 = vmatpush2.bf16.msra.mxu0 0
    %207 = vmatprep.subr.bf16.mxu0 0
    %208 = vmatpush2.bf16.msra.mxu0 0
    %209 = vmatprep.subr.bf16.mxu0 0
    %210 = vmatpush2.bf16.msra.mxu0 0
    %211 = vmatprep.mubr.bf16.mxu0 0
    %212 = vmatmul.mubr.bf16.gmra.mxu0 %v177
    %v213 = vpop.f32.mrf.mxu0
    %v214 = vadd.f32 %v85, %v213
    %v215 = vpop.f32.mrf.mxu0
    %v216 = vpop.f32.mrf.mxu0
    %v217 = vpop.f32.mrf.mxu0
    %218 = vdwg.mxu0
    %v219 = vpack.c.bf16 %v128, %v128
    %v220 = vpack.c.bf16 %v171, %v171
    %v221 = vpack.c.bf16 %v214, %v214
    %222 = vst [vmem:[#allocation7] sm:$0xf] %v219
    %223 = vst [vmem:[#allocation7 + $0x4] sm:$0xf] %v220
    %224 = vst [vmem:[#allocation7 + $0x8] sm:$0xf] %v221
    // Predicated region
    $region22: #{metadata_mlps_forward.1} parent=1 // pred_check
      _
    $region23: #{metadata_mlps_forward.1} parent=1 // pred_check_branch
      %226 = sbr.rel (0) target = $region25
    $region24: #{metadata_mlps_forward.1} parent=1 // pred_region
      %s228 = ssub.s32 192, 192
      %229 = vsyncadd [#allocation4], %s228
      %s230 = sshll.u32 [#allocation7], 4
      %s231 = int_to_ptr.vmem [resolvable:$true] %s230
      %236 = dma.vmem_to_hbm [thread:$0]  %s231, 192, %s3, [#allocation4], 64, 64, 4
    $region25: #{metadata_mlps_forward.1} parent=1 // pred_fallthru
      _
    // Predicated region
    $region26: #{metadata_mlps_forward.1} parent=1 // pred_check
      _
    $region27: #{metadata_mlps_forward.1} parent=1 // pred_check_branch
      %238 = sbr.rel (0) target = $region29
    $region28: #{metadata_mlps_forward.1} parent=1 // pred_region
      %239 = dma.done [#allocation4], 192
    $region29: #{metadata_mlps_forward.1} parent=1 // pred_fallthru
      _
    %240 = vsyncpa [#allocation3], 1
    %241 = vsyncpa [#allocation6], 1
    %242 = vsyncpa [#allocation4], 1

</llo_original>
